<compile_context>
chip_gen: v7x
topology: tpu7x:2x2x1
jax: 0.10.0
libtpu: 0.0.40
codegen_flags: <defaults>
</compile_context>

<pallas_src>
import functools

import jax
import jax.numpy as jnp
from jax.experimental import pallas as pl
from jax.experimental.pallas import tpu as pltpu


def _round_up(x, m):
    return ((x + m - 1) // m) * m


def _gcn_adj_matmul_kernel(xw_ref, adj_ref, b_ref, o_ref, *, block_k, xw_resident):
    """One (row-tile i, k-tile) step of   out = Â @ XW + bias.

    xw_ref  : (N_pad, B*Cout) or (block_k, B*Cout)  compute dtype, node-major
    adj_ref : (t, t)          compute dtype  Â tile
    b_ref   : (1, B*Cout)     f32            bias tiled across batch lanes
    o_ref   : (t, B*Cout)     f32            output tile, resident across k
    """
    k = pl.program_id(1)

    @pl.when(k == 0)
    def _():
        o_ref[...] = jnp.zeros_like(o_ref)

    if xw_resident:
        # Full XW held resident in VMEM (grid-invariant block); slice this
        # k-tile of node rows.  block_k is a multiple of 128.
        start = pl.multiple_of(k * block_k, block_k)
        xw = xw_ref[pl.ds(start, block_k), :]
    else:
        xw = xw_ref[...]

    # Dominant matmul: Â tile @ XW tile, accumulated in f32 directly in o_ref.
    o_ref[...] += jnp.dot(adj_ref[...], xw, preferred_element_type=jnp.float32)

    @pl.when(k == pl.num_programs(1) - 1)
    def _():
        o_ref[...] += b_ref[...]


def gcn_conv_pallas(x, adj_norm, weight, bias, *, tile=512,
                    compute_dtype=jnp.bfloat16,
                    xw_resident_budget_bytes=4 * 1024 * 1024):
    """Batched GCNConv: out[b] = adj_norm @ (x[b] @ weight) + bias."""
    B, N, Cin = x.shape
    Cout = weight.shape[1]
    BC = B * Cout
    hp = jax.lax.Precision.HIGHEST

    # ---- XW = x @ W precomputed once (plain XLA matmul, f32 MXU accumulation;
    #      result cast to compute_dtype == the bf16 quantization point fed to Â).
    xw = jnp.einsum("bni,io->bno",
                    x.astype(compute_dtype), weight.astype(compute_dtype),
                    precision=hp)
    # Pack batch onto the lane axis (node dim leads): (N, B*Cout).
    xw_p = jnp.transpose(xw, (1, 0, 2)).reshape(N, BC).astype(compute_dtype)

    adj_c = adj_norm.astype(compute_dtype)
    bias_p = jnp.tile(bias.reshape(1, Cout).astype(jnp.float32), (1, B))

    # ---- Square Â tile, shrunk for small graphs; pad N up to a tile multiple
    #      (never fall back to a full-extent (N,N) block).
    t = max(128, min(_round_up(tile, 128), _round_up(N, 128)))
    n_pad_to = _round_up(N, t)
    pad_n = n_pad_to - N
    if pad_n:
        adj_c = jnp.pad(adj_c, ((0, pad_n), (0, pad_n)))
        xw_p = jnp.pad(xw_p, ((0, pad_n), (0, 0)))
    N_pad = n_pad_to
    grid = (N_pad // t, N_pad // t)

    # ---- XW block: resident full-extent if it fits a small VMEM budget,
    #      otherwise streamed per k-tile.
    itemsize = jnp.dtype(compute_dtype).itemsize
    xw_bytes = N_pad * BC * itemsize
    xw_resident = bool(xw_bytes <= xw_resident_budget_bytes)
    if xw_resident:
        xw_spec = pl.BlockSpec((N_pad, BC), lambda i, k: (0, 0))
    else:
        xw_spec = pl.BlockSpec((t, BC), lambda i, k: (k, 0))

    kernel = functools.partial(_gcn_adj_matmul_kernel,
                               block_k=t, xw_resident=xw_resident)

    cost = pl.CostEstimate(
        flops=2 * N_pad * N_pad * BC,
        transcendentals=0,
        bytes_accessed=(N_pad * N_pad * itemsize    # Â
                        + N_pad * BC * itemsize     # XW (packed)
                        + BC * 4                    # bias (packed)
                        + N_pad * BC * 4))          # output (packed)

    out_p = pl.pallas_call(
        kernel,
        out_shape=jax.ShapeDtypeStruct((N_pad, BC), jnp.float32),
        grid_spec=pltpu.PrefetchScalarGridSpec(
            num_scalar_prefetch=0,
            grid=grid,
            in_specs=[
                xw_spec,                                     # XW packed
                pl.BlockSpec((t, t), lambda i, k: (i, k)),   # Â tile
                pl.BlockSpec((1, BC), lambda i, k: (0, 0)),  # bias (tiny, shared)
            ],
            out_specs=pl.BlockSpec((t, BC), lambda i, k: (i, 0)),
        ),
        compiler_params=pltpu.CompilerParams(
            dimension_semantics=("parallel", "arbitrary"),
            # Worst case: Â tiles 2*t²*2B + resident XW 2*4 MiB + out 2*t*BC*4B
            # — comfortably under 32 MiB (and v7x's 64 MiB physical VMEM).
            vmem_limit_bytes=32 * 1024 * 1024,
        ),
        cost_estimate=cost,
    )(xw_p, adj_c, bias_p)

    # Drop padded rows and unpack (N, B*Cout) -> (B, N, Cout).
    return jnp.transpose(out_p[:N].reshape(N, B, Cout), (1, 0, 2))


def gcn_normalize(phy_graph):
    """Â = D^{-1/2}(A + I)D^{-1/2}, matching PyG gcn_norm.

    The module discards dense_to_sparse edge weights, so edges are binary, and
    self loops are only added where absent (add_remaining_self_loops semantics).
    """
    n = phy_graph.shape[0]
    a = (phy_graph != 0).astype(jnp.float32)
    a = jnp.maximum(a, jnp.eye(n, dtype=jnp.float32))   # add *remaining* self loops
    deg = a.sum(axis=1)
    dinv = jnp.where(deg > 0, jax.lax.rsqrt(deg), 0.0)
    return dinv[:, None] * a * dinv[None, :]


def gcn_layer_forward(inputs, adj_norm, weight, bias):
    """Pallas analogue of _GCNLayer.forward((x, memory))."""
    x, memory = inputs
    del memory  # only consumed by PGConv, see TODO below
    attention_feature = gcn_conv_pallas(x, adj_norm, weight, bias)
    # TODO(synk): PGConv (probability_feature, elbo) has no provided source; its
    # contribution to `out` and the elbo term are not reproduced here.
    elbo = jnp.float32(0.0)
    out = attention_feature  # + probability_feature (PGConv, unavailable)
    return out, elbo


if __name__ == "__main__":
    B, N, Cin, Cout = 2, 8, 4, 32

    key = jax.random.PRNGKey(0)
    k_x, k_mem, k_w = jax.random.split(key, 3)

    x = jax.random.normal(k_x, (B, N, Cin), dtype=jnp.float32)
    memory = jax.random.normal(k_mem, (B, N, Cout), dtype=jnp.float32)

    # Deterministic physical graph: undirected ring over N nodes (zero diagonal).
    idx = jnp.arange(N)
    phy_graph = jnp.zeros((N, N), jnp.float32)
    phy_graph = phy_graph.at[idx, (idx + 1) % N].set(1.0)
    phy_graph = phy_graph.at[(idx + 1) % N, idx].set(1.0)

    # GCNConv parameters (deterministic init; PyG default bias init is zeros).
    weight = jax.random.normal(k_w, (Cin, Cout), jnp.float32) * (1.0 / jnp.sqrt(Cin))
    bias = jnp.zeros((1, Cout), jnp.float32)

    adj_norm = gcn_normalize(phy_graph)

    # Fast (bf16-fed) path, as used by the layer.
    fwd = jax.jit(gcn_layer_forward)
    out, elbo = fwd((x, memory), adj_norm, weight, bias)
    out = jax.block_until_ready(out)
    assert out.shape == (B, N, Cout)

    hp = jax.lax.Precision.HIGHEST

    # Tight correctness check: same kernel run in f32 compute mode vs f32 reference.
    out_f32 = gcn_conv_pallas(x, adj_norm, weight, bias, compute_dtype=jnp.float32)
    ref_f32 = jnp.einsum("ij,bjc->bic", adj_norm,
                         jnp.einsum("bni,io->bno", x, weight, precision=hp),
                         precision=hp) + bias
    assert jnp.allclose(out_f32, ref_f32, atol=1e-4, rtol=1e-4)

    # bf16 fast path vs a reference that mirrors its quantization points
    # (XW quantized to bf16 before the Â matmul, f32 accumulation).
    bf = lambda a: a.astype(jnp.bfloat16).astype(jnp.float32)
    xw_q = bf(jnp.einsum("bni,io->bno", bf(x), bf(weight), precision=hp))
    ref_bf = jnp.einsum("ij,bjc->bic", bf(adj_norm), xw_q, precision=hp) + bias
    assert jnp.allclose(out, ref_bf, atol=2e-2, rtol=2e-2)

    print("KERNEL_OK")
</pallas_src>

<mosaic_0001>
module attributes {stable_mosaic.version = 11 : i64} {
  func.func @_gcn_adj_matmul_kernel(%arg0: i32, %arg1: i32, %arg2: memref<128x64xbf16, #tpu.memory_space<vmem>>, %arg3: memref<128x128xbf16, #tpu.memory_space<vmem>>, %arg4: memref<1x64xf32, #tpu.memory_space<vmem>>, %arg5: memref<128x64xf32, #tpu.memory_space<vmem>>) attributes {dimension_semantics = [#tpu.dimension_semantics<parallel>, #tpu.dimension_semantics<arbitrary>], iteration_bounds = array<i64: 1, 1>, scalar_prefetch = 0 : i64, scratch_operands = 0 : i64, tpu.core_type = #tpu.core_type<tc>, window_params = [{pipeline_mode = #tpu.pipeline_mode<synchronous>, transform_indices = @transform_0, window_bounds = array<i64: 128, 64>}, {transform_indices = @transform_1, window_bounds = array<i64: 128, 128>}, {pipeline_mode = #tpu.pipeline_mode<synchronous>, transform_indices = @transform_2, window_bounds = array<i64: 1, 64>}, {transform_indices = @transform_3, window_bounds = array<i64: 128, 64>}]} {
    %c0_i32 = arith.constant 0 : i32
    %0 = arith.cmpi eq, %arg1, %c0_i32 : i32
    %1 = arith.extui %0 : i1 to i32
    %c0_i32_0 = arith.constant 0 : i32
    %2 = arith.cmpi ne, %1, %c0_i32_0 : i32
    scf.if %2 {
      %cst_9 = arith.constant 0.000000e+00 : f32
      %15 = vector.broadcast %cst_9 : f32 to vector<128x64xf32>
      %c0_10 = arith.constant 0 : index
      %c0_11 = arith.constant 0 : index
      %16 = vector.load %arg5[%c0_10, %c0_11] : memref<128x64xf32, #tpu.memory_space<vmem>>, vector<128x64xf32>
      tpu.vector_store %arg5[%c0_10, %c0_11], %15 {strides = array<i32>} : memref<128x64xf32, #tpu.memory_space<vmem>>, vector<128x64xf32>,
    } else {
    }
    %c128_i32 = arith.constant 128 : i32
    %3 = arith.muli %arg1, %c128_i32 : i32
    %4 = tpu.assume_multiple %3, 128 : i32
    %5 = arith.index_cast %4 : i32 to index
    %c0 = arith.constant 0 : index
    %6 = vector.load %arg2[%5, %c0] : memref<128x64xbf16, #tpu.memory_space<vmem>>, vector<128x64xbf16>
    %c0_1 = arith.constant 0 : index
    %c0_2 = arith.constant 0 : index
    %7 = vector.load %arg5[%c0_1, %c0_2] : memref<128x64xf32, #tpu.memory_space<vmem>>, vector<128x64xf32>
    %c0_3 = arith.constant 0 : index
    %c0_4 = arith.constant 0 : index
    %8 = vector.load %arg3[%c0_3, %c0_4] : memref<128x128xbf16, #tpu.memory_space<vmem>>, vector<128x128xbf16>
    %cst = arith.constant dense<0.000000e+00> : vector<128x64xf32>
    %9 = tpu.matmul %8, %6, %cst {dimension_numbers = #tpu.dot_dimension_numbers<[1], [0], [0], [1], [0, 0, 1, 1], [], []>} : vector<128x128xbf16>, vector<128x64xbf16>, vector<128x64xf32> -> vector<128x64xf32>
    %10 = arith.addf %7, %9 : vector<128x64xf32>
    %c0_5 = arith.constant 0 : index
    %c0_6 = arith.constant 0 : index
    %11 = vector.load %arg5[%c0_5, %c0_6] : memref<128x64xf32, #tpu.memory_space<vmem>>, vector<128x64xf32>
    tpu.vector_store %arg5[%c0_5, %c0_6], %10 {strides = array<i32>} : memref<128x64xf32, #tpu.memory_space<vmem>>, vector<128x64xf32>,
    %c0_i32_7 = arith.constant 0 : i32
    %12 = arith.cmpi eq, %arg1, %c0_i32_7 : i32
    %13 = arith.extui %12 : i1 to i32
    %c0_i32_8 = arith.constant 0 : i32
    %14 = arith.cmpi ne, %13, %c0_i32_8 : i32
    scf.if %14 {
      %c0_9 = arith.constant 0 : index
      %c0_10 = arith.constant 0 : index
      %15 = vector.load %arg5[%c0_9, %c0_10] : memref<128x64xf32, #tpu.memory_space<vmem>>, vector<128x64xf32>
      %c0_11 = arith.constant 0 : index
      %c0_12 = arith.constant 0 : index
      %16 = vector.load %arg4[%c0_11, %c0_12] : memref<1x64xf32, #tpu.memory_space<vmem>>, vector<1x64xf32>
      %17 = vector.broadcast %16 : vector<1x64xf32> to vector<128x64xf32>
      %18 = arith.addf %15, %17 : vector<128x64xf32>
      %c0_13 = arith.constant 0 : index
      %c0_14 = arith.constant 0 : index
      %19 = vector.load %arg5[%c0_13, %c0_14] : memref<128x64xf32, #tpu.memory_space<vmem>>, vector<128x64xf32>
      tpu.vector_store %arg5[%c0_13, %c0_14], %18 {strides = array<i32>} : memref<128x64xf32, #tpu.memory_space<vmem>>, vector<128x64xf32>,
    } else {
    }
    return
  }
  func.func @transform_0(%arg0: i32, %arg1: i32) -> (i32, i32) {
    %c0_i32 = arith.constant 0 : i32
    %c0_i32_0 = arith.constant 0 : i32
    %c0_i32_1 = arith.constant 0 : i32
    return %c0_i32, %c0_i32_0 : i32, i32
  }
  func.func @transform_1(%arg0: i32, %arg1: i32) -> (i32, i32) {
    %c0_i32 = arith.constant 0 : i32
    return %arg0, %arg1 : i32, i32
  }
  func.func @transform_2(%arg0: i32, %arg1: i32) -> (i32, i32) {
    %c0_i32 = arith.constant 0 : i32
    %c0_i32_0 = arith.constant 0 : i32
    %c0_i32_1 = arith.constant 0 : i32
    return %c0_i32, %c0_i32_0 : i32, i32
  }
  func.func @transform_3(%arg0: i32, %arg1: i32) -> (i32, i32) {
    %c0_i32 = arith.constant 0 : i32
    %c0_i32_0 = arith.constant 0 : i32
    return %arg0, %c0_i32 : i32, i32
  }
}

</mosaic_0001>

<llo_original>
// kernel: gcn_layer_forward.1
$region0: #{gcn_layer_forward.1}
  #allocation0 [shape = 'u32[]', space=smem, size = 0x4, offset = 0x4, fixed_abs, tag = 'smem constant byte address 0x4 - core index']
  #allocation1 [shape = 'u32[144,128]{1,0:T(1,128)}', space=vmem, size = 0x12000, scoped, tag = 'internal scratch']
  %s0 = inlined_call_operand.vmem [shape: bf16[128,64], index: 0, kind: input, shape index: {}]
  %s1 = inlined_call_operand.vmem [shape: bf16[128,128], index: 1, kind: input, shape index: {}]
  %s2 = inlined_call_operand.vmem [shape: f32[1,64], index: 2, kind: input, shape index: {}]
  %s3 = inlined_call_operand.vmem [shape: f32[128,64], index: 3, kind: output, shape index: {}]
  %s4 = sld [smem:[#allocation0]]
  $region30: #{gcn_layer_forward.1} parent=0
    _
  %s6 = ssub.s32 1, %s4
  %s7 = scalar_select 0, %s6, %s4
  // Predicated region
  $region2: #{gcn_layer_forward.1} parent=0 // pred_check
    _
  $region3: #{gcn_layer_forward.1} parent=0 // pred_check_branch
    %9 = sbr.rel (0) target = $region5
  $region4: #{gcn_layer_forward.1} parent=0 // pred_region
    _
  $region5: #{gcn_layer_forward.1} parent=0 // pred_fallthru
    _
  // Predicated region
  $region6: #{gcn_layer_forward.1} parent=0 // pred_check
    _
  $region7: #{gcn_layer_forward.1} parent=0 // pred_check_branch
    %11 = sbr.rel (0) target = $region9
  $region8: #{gcn_layer_forward.1} parent=0 // pred_region
    _
  $region9: #{gcn_layer_forward.1} parent=0 // pred_fallthru
    _
  // Predicated region
  $region10: #{gcn_layer_forward.1} parent=0 // pred_check
    _
  $region11: #{gcn_layer_forward.1} parent=0 // pred_check_branch
    %13 = sbr.rel (0) target = $region13
  $region12: #{gcn_layer_forward.1} parent=0 // pred_region
    _
  $region13: #{gcn_layer_forward.1} parent=0 // pred_fallthru
    _
  %p15 = scmp.eq.s32.totalorder 0, 0
  // Predicated region
  $region14: #{gcn_layer_forward.1} parent=0 // pred_check
    %p16 = pneg %p15
  $region15: #{gcn_layer_forward.1} parent=0 // pred_check_branch
    %18 = sbr.rel (%p16) target = $region17
  $region16: #{gcn_layer_forward.1} parent=0 // pred_region
    %vm19 = vcmask 523264
    %20 = vst.msk [vmem:[%s3] sm:$0xff] %vm19, 0.0
    %21 = vst.msk [vmem:[%s3 + $0x8] sm:$0xff] %vm19, 0.0
    %22 = vst.msk [vmem:[%s3 + $0x10] sm:$0xff] %vm19, 0.0
    %23 = vst.msk [vmem:[%s3 + $0x18] sm:$0xff] %vm19, 0.0
    %24 = vst.msk [vmem:[%s3 + $0x20] sm:$0xff] %vm19, 0.0
    %25 = vst.msk [vmem:[%s3 + $0x28] sm:$0xff] %vm19, 0.0
    %26 = vst.msk [vmem:[%s3 + $0x30] sm:$0xff] %vm19, 0.0
    %27 = vst.msk [vmem:[%s3 + $0x38] sm:$0xff] %vm19, 0.0
    %28 = vst.msk [vmem:[%s3 + $0x40] sm:$0xff] %vm19, 0.0
    %29 = vst.msk [vmem:[%s3 + $0x48] sm:$0xff] %vm19, 0.0
    %30 = vst.msk [vmem:[%s3 + $0x50] sm:$0xff] %vm19, 0.0
    %31 = vst.msk [vmem:[%s3 + $0x58] sm:$0xff] %vm19, 0.0
    %32 = vst.msk [vmem:[%s3 + $0x60] sm:$0xff] %vm19, 0.0
    %33 = vst.msk [vmem:[%s3 + $0x68] sm:$0xff] %vm19, 0.0
    %34 = vst.msk [vmem:[%s3 + $0x70] sm:$0xff] %vm19, 0.0
    %35 = vst.msk [vmem:[%s3 + $0x78] sm:$0xff] %vm19, 0.0
  $region17: #{gcn_layer_forward.1} parent=0 // pred_fallthru
    _
  %s36 = smul.u32 0, 128
  %s37 = sshra.s32 %s36, 3
  %s38 = sand.u32 %s36, 7
  %s39 = smul.addr %s37, 4
  %s40 = scalar_lea.vmem %s0, %s39
  %v41 = vld [vmem:[%s40] sm:$0xf]
  %v42 = vld [vmem:[%s40 + $0x4] sm:$0xf]
  %v43 = vld [vmem:[%s40 + $0x8] sm:$0xf]
  %v44 = vld [vmem:[%s40 + $0xc] sm:$0xf]
  %v45 = vld [vmem:[%s40 + $0x10] sm:$0xf]
  %v46 = vld [vmem:[%s40 + $0x14] sm:$0xf]
  %v47 = vld [vmem:[%s40 + $0x18] sm:$0xf]
  %v48 = vld [vmem:[%s40 + $0x1c] sm:$0xf]
  %v49 = vld [vmem:[%s40 + $0x20] sm:$0xf]
  %v50 = vld [vmem:[%s40 + $0x24] sm:$0xf]
  %v51 = vld [vmem:[%s40 + $0x28] sm:$0xf]
  %v52 = vld [vmem:[%s40 + $0x2c] sm:$0xf]
  %v53 = vld [vmem:[%s40 + $0x30] sm:$0xf]
  %v54 = vld [vmem:[%s40 + $0x34] sm:$0xf]
  %v55 = vld [vmem:[%s40 + $0x38] sm:$0xf]
  %v56 = vld [vmem:[%s40 + $0x3c] sm:$0xf]
  %v57 = vld [vmem:[%s3] sm:$0xff]
  %v58 = vld [vmem:[%s3 + $0x8] sm:$0xff]
  %v59 = vld [vmem:[%s3 + $0x10] sm:$0xff]
  %v60 = vld [vmem:[%s3 + $0x18] sm:$0xff]
  %v61 = vld [vmem:[%s3 + $0x20] sm:$0xff]
  %v62 = vld [vmem:[%s3 + $0x28] sm:$0xff]
  %v63 = vld [vmem:[%s3 + $0x30] sm:$0xff]
  %v64 = vld [vmem:[%s3 + $0x38] sm:$0xff]
  %v65 = vld [vmem:[%s3 + $0x40] sm:$0xff]
  %v66 = vld [vmem:[%s3 + $0x48] sm:$0xff]
  %v67 = vld [vmem:[%s3 + $0x50] sm:$0xff]
  %v68 = vld [vmem:[%s3 + $0x58] sm:$0xff]
  %v69 = vld [vmem:[%s3 + $0x60] sm:$0xff]
  %v70 = vld [vmem:[%s3 + $0x68] sm:$0xff]
  %v71 = vld [vmem:[%s3 + $0x70] sm:$0xff]
  %v72 = vld [vmem:[%s3 + $0x78] sm:$0xff]
  %v73 = vld [vmem:[%s1] sm:$0xf]
  %v74 = vld [vmem:[%s1 + $0x4] sm:$0xf]
  %v75 = vld [vmem:[%s1 + $0x8] sm:$0xf]
  %v76 = vld [vmem:[%s1 + $0xc] sm:$0xf]
  %v77 = vld [vmem:[%s1 + $0x10] sm:$0xf]
  %v78 = vld [vmem:[%s1 + $0x14] sm:$0xf]
  %v79 = vld [vmem:[%s1 + $0x18] sm:$0xf]
  %v80 = vld [vmem:[%s1 + $0x1c] sm:$0xf]
  %v81 = vld [vmem:[%s1 + $0x20] sm:$0xf]
  %v82 = vld [vmem:[%s1 + $0x24] sm:$0xf]
  %v83 = vld [vmem:[%s1 + $0x28] sm:$0xf]
  %v84 = vld [vmem:[%s1 + $0x2c] sm:$0xf]
  %v85 = vld [vmem:[%s1 + $0x30] sm:$0xf]
  %v86 = vld [vmem:[%s1 + $0x34] sm:$0xf]
  %v87 = vld [vmem:[%s1 + $0x38] sm:$0xf]
  %v88 = vld [vmem:[%s1 + $0x3c] sm:$0xf]
  %v105 = vunpack.c.l.b16 %v73
  %v106 = vunpack.c.l.b16 %v74
  %v107 = vunpack.c.l.b16 %v75
  %v108 = vunpack.c.l.b16 %v76
  %v109 = vunpack.c.l.b16 %v77
  %v110 = vunpack.c.l.b16 %v78
  %v111 = vunpack.c.l.b16 %v79
  %v112 = vunpack.c.l.b16 %v80
  %v113 = vunpack.c.l.b16 %v81
  %v114 = vunpack.c.l.b16 %v82
  %v115 = vunpack.c.l.b16 %v83
  %v116 = vunpack.c.l.b16 %v84
  %v117 = vunpack.c.l.b16 %v85
  %v118 = vunpack.c.l.b16 %v86
  %v119 = vunpack.c.l.b16 %v87
  %v120 = vunpack.c.l.b16 %v88
  %v121 = vpack.c.b16 %v106, %v105
  %v122 = vpack.c.b16 %v108, %v107
  %v123 = vpack.c.b16 %v110, %v109
  %v124 = vpack.c.b16 %v112, %v111
  %v125 = vpack.c.b16 %v114, %v113
  %v126 = vpack.c.b16 %v116, %v115
  %v127 = vpack.c.b16 %v118, %v117
  %v128 = vpack.c.b16 %v120, %v119
  %v153 = vunpack.c.l.b16 %v41
  %v154 = vunpack.c.l.b16 %v42
  %v155 = vunpack.c.l.b16 %v43
  %v156 = vunpack.c.l.b16 %v44
  %v157 = vunpack.c.l.b16 %v45
  %v158 = vunpack.c.l.b16 %v46
  %v159 = vunpack.c.l.b16 %v47
  %v160 = vunpack.c.l.b16 %v48
  %v161 = vunpack.c.l.b16 %v49
  %v162 = vunpack.c.l.b16 %v50
  %v163 = vunpack.c.l.b16 %v51
  %v164 = vunpack.c.l.b16 %v52
  %v165 = vunpack.c.l.b16 %v53
  %v166 = vunpack.c.l.b16 %v54
  %v167 = vunpack.c.l.b16 %v55
  %v168 = vunpack.c.l.b16 %v56
  %v169 = vpack.c.b16 %v154, %v153
  %v170 = vpack.c.b16 %v156, %v155
  %v171 = vpack.c.b16 %v158, %v157
  %v172 = vpack.c.b16 %v160, %v159
  %v173 = vpack.c.b16 %v162, %v161
  %v174 = vpack.c.b16 %v164, %v163
  %v175 = vpack.c.b16 %v166, %v165
  %v176 = vpack.c.b16 %v168, %v167
  %185 = vmatprep.subr.bf16.mxu0 0
  %186 = vmatpush1.bf16.msra.mxu0 %v169
  %187 = vmatprep.subr.bf16.mxu0 0
  %188 = vmatpush1.bf16.msra.mxu0 %v170
  %189 = vmatprep.subr.bf16.mxu0 0
  %190 = vmatpush1.bf16.msra.mxu0 %v171
  %191 = vmatprep.subr.bf16.mxu0 0
  %192 = vmatpush1.bf16.msra.mxu0 %v172
  %193 = vmatprep.subr.bf16.mxu0 0
  %194 = vmatpush1.bf16.msra.mxu0 %v173
  %195 = vmatprep.subr.bf16.mxu0 0
  %196 = vmatpush1.bf16.msra.mxu0 %v174
  %197 = vmatprep.subr.bf16.mxu0 0
  %198 = vmatpush1.bf16.msra.mxu0 %v175
  %199 = vmatprep.subr.bf16.mxu0 0
  %200 = vmatpush1.bf16.msra.mxu0 %v176
  %201 = vmatprep.subr.bf16.mxu0 0
  %202 = vmatpush1.bf16.msra.mxu0 0
  %203 = vmatprep.subr.bf16.mxu0 0
  %204 = vmatpush1.bf16.msra.mxu0 0
  %205 = vmatprep.subr.bf16.mxu0 0
  %206 = vmatpush1.bf16.msra.mxu0 0
  %207 = vmatprep.subr.bf16.mxu0 0
  %208 = vmatpush1.bf16.msra.mxu0 0
  %209 = vmatprep.subr.bf16.mxu0 0
  %210 = vmatpush1.bf16.msra.mxu0 0
  %211 = vmatprep.subr.bf16.mxu0 0
  %212 = vmatpush1.bf16.msra.mxu0 0
  %213 = vmatprep.subr.bf16.mxu0 0
  %214 = vmatpush1.bf16.msra.mxu0 0
  %215 = vmatprep.subr.bf16.mxu0 0
  %216 = vmatpush1.bf16.msra.mxu0 0
  %217 = vmatprep.mubr.bf16.mxu0 0
  %218 = vmatmul.mubr.bf16.gmra.mrb[0].mxu0 %v121
  %v219 = vpop.f32.mrb[0].mxu0
  %v220 = vadd.f32 0.0, %v219
  %v221 = vpop.f32.mrb[0].mxu0
  %v222 = vpop.f32.mrb[0].mxu0
  %v223 = vadd.f32 0.0, %v222
  %v224 = vpop.f32.mrb[0].mxu0
  %225 = vmatprep.mubr.bf16.mxu0 0
  %226 = vmatmul.mubr.bf16.gmra.mrb[0].mxu0 %v122
  %v227 = vpop.f32.mrb[0].mxu0
  %v228 = vadd.f32 0.0, %v227
  %v229 = vpop.f32.mrb[0].mxu0
  %v230 = vpop.f32.mrb[0].mxu0
  %v231 = vadd.f32 0.0, %v230
  %v232 = vpop.f32.mrb[0].mxu0
  %233 = vmatprep.mubr.bf16.mxu0 0
  %234 = vmatmul.mubr.bf16.gmra.mrb[0].mxu0 %v123
  %v235 = vpop.f32.mrb[0].mxu0
  %v236 = vadd.f32 0.0, %v235
  %v237 = vpop.f32.mrb[0].mxu0
  %v238 = vpop.f32.mrb[0].mxu0
  %v239 = vadd.f32 0.0, %v238
  %v240 = vpop.f32.mrb[0].mxu0
  %241 = vmatprep.mubr.bf16.mxu0 0
  %242 = vmatmul.mubr.bf16.gmra.mrb[0].mxu0 %v124
  %v243 = vpop.f32.mrb[0].mxu0
  %v244 = vadd.f32 0.0, %v243
  %v245 = vpop.f32.mrb[0].mxu0
  %v246 = vpop.f32.mrb[0].mxu0
  %v247 = vadd.f32 0.0, %v246
  %v248 = vpop.f32.mrb[0].mxu0
  %249 = vmatprep.mubr.bf16.mxu0 0
  %250 = vmatmul.mubr.bf16.gmra.mrb[0].mxu0 %v125
  %v251 = vpop.f32.mrb[0].mxu0
  %v252 = vadd.f32 0.0, %v251
  %v253 = vpop.f32.mrb[0].mxu0
  %v254 = vpop.f32.mrb[0].mxu0
  %v255 = vadd.f32 0.0, %v254
  %v256 = vpop.f32.mrb[0].mxu0
  %257 = vmatprep.mubr.bf16.mxu0 0
  %258 = vmatmul.mubr.bf16.gmra.mrb[0].mxu0 %v126
  %v259 = vpop.f32.mrb[0].mxu0
  %v260 = vadd.f32 0.0, %v259
  %v261 = vpop.f32.mrb[0].mxu0
  %v262 = vpop.f32.mrb[0].mxu0
  %v263 = vadd.f32 0.0, %v262
  %v264 = vpop.f32.mrb[0].mxu0
  %265 = vmatprep.mubr.bf16.mxu0 0
  %266 = vmatmul.mubr.bf16.gmra.mrb[0].mxu0 %v127
  %v267 = vpop.f32.mrb[0].mxu0
  %v268 = vadd.f32 0.0, %v267
  %v269 = vpop.f32.mrb[0].mxu0
  %v270 = vpop.f32.mrb[0].mxu0
  %v271 = vadd.f32 0.0, %v270
  %v272 = vpop.f32.mrb[0].mxu0
  %273 = vmatprep.mubr.bf16.mxu0 0
  %274 = vmatmul.mubr.bf16.gmra.mrb[0].mxu0 %v128
  %v275 = vpop.f32.mrb[0].mxu0
  %v276 = vadd.f32 0.0, %v275
  %v277 = vpop.f32.mrb[0].mxu0
  %v278 = vpop.f32.mrb[0].mxu0
  %v279 = vadd.f32 0.0, %v278
  %v280 = vpop.f32.mrb[0].mxu0
  %281 = vdwg.mxu0
  %v282 = vadd.f32 %v57, %v220
  %v283 = vadd.f32 %v58, %v223
  %v284 = vadd.f32 %v59, %v228
  %v285 = vadd.f32 %v60, %v231
  %v286 = vadd.f32 %v61, %v236
  %v287 = vadd.f32 %v62, %v239
  %v288 = vadd.f32 %v63, %v244
  %v289 = vadd.f32 %v64, %v247
  %v290 = vadd.f32 %v65, %v252
  %v291 = vadd.f32 %v66, %v255
  %v292 = vadd.f32 %v67, %v260
  %v293 = vadd.f32 %v68, %v263
  %v294 = vadd.f32 %v69, %v268
  %v295 = vadd.f32 %v70, %v271
  %v296 = vadd.f32 %v71, %v276
  %v297 = vadd.f32 %v72, %v279
  %vm298 = vcmask 523264
  %299 = vst.msk [vmem:[%s3] sm:$0xff] %vm298, %v282
  %300 = vst.msk [vmem:[%s3 + $0x8] sm:$0xff] %vm298, %v283
  %301 = vst.msk [vmem:[%s3 + $0x10] sm:$0xff] %vm298, %v284
  %302 = vst.msk [vmem:[%s3 + $0x18] sm:$0xff] %vm298, %v285
  %303 = vst.msk [vmem:[%s3 + $0x20] sm:$0xff] %vm298, %v286
  %304 = vst.msk [vmem:[%s3 + $0x28] sm:$0xff] %vm298, %v287
  %305 = vst.msk [vmem:[%s3 + $0x30] sm:$0xff] %vm298, %v288
  %306 = vst.msk [vmem:[%s3 + $0x38] sm:$0xff] %vm298, %v289
  %307 = vst.msk [vmem:[%s3 + $0x40] sm:$0xff] %vm298, %v290
  %308 = vst.msk [vmem:[%s3 + $0x48] sm:$0xff] %vm298, %v291
  %309 = vst.msk [vmem:[%s3 + $0x50] sm:$0xff] %vm298, %v292
  %310 = vst.msk [vmem:[%s3 + $0x58] sm:$0xff] %vm298, %v293
  %311 = vst.msk [vmem:[%s3 + $0x60] sm:$0xff] %vm298, %v294
  %312 = vst.msk [vmem:[%s3 + $0x68] sm:$0xff] %vm298, %v295
  %313 = vst.msk [vmem:[%s3 + $0x70] sm:$0xff] %vm298, %v296
  %314 = vst.msk [vmem:[%s3 + $0x78] sm:$0xff] %vm298, %v297
  // Predicated region
  $region18: #{gcn_layer_forward.1} parent=0 // pred_check
    %p315 = pneg %p15
  $region19: #{gcn_layer_forward.1} parent=0 // pred_check_branch
    %317 = sbr.rel (%p315) target = $region21
  $region20: #{gcn_layer_forward.1} parent=0 // pred_region
    %v318 = vld [vmem:[%s3] sm:$0xff]
    %v319 = vld [vmem:[%s3 + $0x8] sm:$0xff]
    %v320 = vld [vmem:[%s3 + $0x10] sm:$0xff]
    %v321 = vld [vmem:[%s3 + $0x18] sm:$0xff]
    %v322 = vld [vmem:[%s3 + $0x20] sm:$0xff]
    %v323 = vld [vmem:[%s3 + $0x28] sm:$0xff]
    %v324 = vld [vmem:[%s3 + $0x30] sm:$0xff]
    %v325 = vld [vmem:[%s3 + $0x38] sm:$0xff]
    %v326 = vld [vmem:[%s3 + $0x40] sm:$0xff]
    %v327 = vld [vmem:[%s3 + $0x48] sm:$0xff]
    %v328 = vld [vmem:[%s3 + $0x50] sm:$0xff]
    %v329 = vld [vmem:[%s3 + $0x58] sm:$0xff]
    %v330 = vld [vmem:[%s3 + $0x60] sm:$0xff]
    %v331 = vld [vmem:[%s3 + $0x68] sm:$0xff]
    %v332 = vld [vmem:[%s3 + $0x70] sm:$0xff]
    %v333 = vld [vmem:[%s3 + $0x78] sm:$0xff]
    %v334 = vld [vmem:[%s2] sm:$0x1]
    %v336 = vlaneseq
    %v337 = vshrl.u32 %v336, 7
    %v338 = vsub.s32 0, %v337
    %v339 = vrot.slane %v334, %v338
    %v341 = vadd.f32 %v318, %v339
    %v342 = vadd.f32 %v319, %v339
    %v343 = vadd.f32 %v320, %v339
    %v344 = vadd.f32 %v321, %v339
    %v345 = vadd.f32 %v322, %v339
    %v346 = vadd.f32 %v323, %v339
    %v347 = vadd.f32 %v324, %v339
    %v348 = vadd.f32 %v325, %v339
    %v349 = vadd.f32 %v326, %v339
    %v350 = vadd.f32 %v327, %v339
    %v351 = vadd.f32 %v328, %v339
    %v352 = vadd.f32 %v329, %v339
    %v353 = vadd.f32 %v330, %v339
    %v354 = vadd.f32 %v331, %v339
    %v355 = vadd.f32 %v332, %v339
    %v356 = vadd.f32 %v333, %v339
    %357 = vst.msk [vmem:[%s3] sm:$0xff] %vm298, %v341
    %358 = vst.msk [vmem:[%s3 + $0x8] sm:$0xff] %vm298, %v342
    %359 = vst.msk [vmem:[%s3 + $0x10] sm:$0xff] %vm298, %v343
    %360 = vst.msk [vmem:[%s3 + $0x18] sm:$0xff] %vm298, %v344
    %361 = vst.msk [vmem:[%s3 + $0x20] sm:$0xff] %vm298, %v345
    %362 = vst.msk [vmem:[%s3 + $0x28] sm:$0xff] %vm298, %v346
    %363 = vst.msk [vmem:[%s3 + $0x30] sm:$0xff] %vm298, %v347
    %364 = vst.msk [vmem:[%s3 + $0x38] sm:$0xff] %vm298, %v348
    %365 = vst.msk [vmem:[%s3 + $0x40] sm:$0xff] %vm298, %v349
    %366 = vst.msk [vmem:[%s3 + $0x48] sm:$0xff] %vm298, %v350
    %367 = vst.msk [vmem:[%s3 + $0x50] sm:$0xff] %vm298, %v351
    %368 = vst.msk [vmem:[%s3 + $0x58] sm:$0xff] %vm298, %v352
    %369 = vst.msk [vmem:[%s3 + $0x60] sm:$0xff] %vm298, %v353
    %370 = vst.msk [vmem:[%s3 + $0x68] sm:$0xff] %vm298, %v354
    %371 = vst.msk [vmem:[%s3 + $0x70] sm:$0xff] %vm298, %v355
    %372 = vst.msk [vmem:[%s3 + $0x78] sm:$0xff] %vm298, %v356
  $region21: #{gcn_layer_forward.1} parent=0 // pred_fallthru
    _
  // Predicated region
  $region22: #{gcn_layer_forward.1} parent=0 // pred_check
    _
  $region23: #{gcn_layer_forward.1} parent=0 // pred_check_branch
    %374 = sbr.rel (0) target = $region25
  $region24: #{gcn_layer_forward.1} parent=0 // pred_region
    _
  $region25: #{gcn_layer_forward.1} parent=0 // pred_fallthru
    _
  // Predicated region
  $region26: #{gcn_layer_forward.1} parent=0 // pred_check
    _
  $region27: #{gcn_layer_forward.1} parent=0 // pred_check_branch
    %376 = sbr.rel (0) target = $region29
  $region28: #{gcn_layer_forward.1} parent=0 // pred_region
    _
  $region29: #{gcn_layer_forward.1} parent=0 // pred_fallthru
    _

</llo_original>
